<compile_context>
chip_gen: v7x
topology: tpu7x:2x2x1
jax: 0.10.0
libtpu: 0.0.40
codegen_flags: <defaults>
</compile_context>

<pallas_src>
import functools

import numpy as np
import jax
import jax.numpy as jnp
from jax.experimental import pallas as pl
from jax.experimental.pallas import tpu as pltpu

FC = [512, 256, 128, 64]
FC3_PAD = 128  # fc4/fc5 tail padded from 64 -> 128 lanes (zeros)


def _critic_kernel(state_ref, action_ref,
                   w1_ref, b1_ref,
                   w2s_ref, w2a_ref, b2_ref,
                   w3_ref, b3_ref,
                   w4_ref, b4_ref,
                   w5_ref, b5_ref,
                   out_ref, *, lane_dense_out):
    # Cast the batch tile once to bf16 for the MXU; all dots accumulate in f32.
    state = state_ref[...].astype(jnp.bfloat16)
    action = action_ref[...].astype(jnp.bfloat16)

    # fcs1 + ReLU  (bias-add / ReLU kept in f32)
    xs = jnp.dot(state, w1_ref[...], preferred_element_type=jnp.float32) + b1_ref[...]
    xs = jnp.maximum(xs, 0.0).astype(jnp.bfloat16)

    # fc2 on concat([xs, action]) + ReLU, expressed as a split matmul (no copy).
    x = (jnp.dot(xs, w2s_ref[...], preferred_element_type=jnp.float32)
         + jnp.dot(action, w2a_ref[...], preferred_element_type=jnp.float32)
         + b2_ref[...])
    x = jnp.maximum(x, 0.0).astype(jnp.bfloat16)

    # fc3 + ReLU
    x = jnp.dot(x, w3_ref[...], preferred_element_type=jnp.float32) + b3_ref[...]
    x = jnp.maximum(x, 0.0).astype(jnp.bfloat16)

    # fc4 + ReLU on the lane-padded [128,128] weight (cols 64..127 are zero).
    x = jnp.dot(x, w4_ref[...], preferred_element_type=jnp.float32) + b4_ref[...]
    x = jnp.maximum(x, 0.0)  # [tb, 128] f32

    # fc5 (out_features == 1): VPU multiply + full-lane reduction (padded w5 cols are 0).
    q = jnp.sum(x * w5_ref[...], axis=-1, keepdims=True) + b5_ref[...]  # [tb, 1] f32

    if lane_dense_out:
        # Lane-dense store: [tb,1] -> [1,tb] relayout (XLU), unmasked vst to the row block.
        out_ref[...] = q.reshape(1, -1)
    else:
        out_ref[...] = q


def _round_up(x, m):
    return (x + m - 1) // m * m


def _is_two_core_chip():
    """True on v7x-style chips with 2 TensorCores per chip."""
    try:
        return "v7" in jax.devices()[0].device_kind.lower()
    except Exception:  # pragma: no cover - be conservative if detection fails
        return False


def _choose_tile(b_pad, block_b, two_core):
    """Largest multiple-of-16 divisor of b_pad that is <= block_b (and, on 2-core
    chips, small enough to leave >= 2 grid steps)."""
    cap = min(block_b, b_pad)
    if two_core and b_pad >= 32:
        cap = min(cap, max(16, b_pad // 2))
    t = (cap // 16) * 16
    while t >= 16:
        if b_pad % t == 0:
            return t
        t -= 16
    return b_pad  # unreachable: 16 always divides b_pad


def critic_forward(state, action, params, *, block_b=1024):
    """state: [B, state_size] f32, action: [B, action_size] f32 -> [B, 1] f32."""
    B, state_size = state.shape
    action_size = action.shape[1]

    block_b = max(16, _round_up(block_b, 16))
    b_pad = _round_up(B, 16)
    tb = _choose_tile(b_pad, block_b, _is_two_core_chip())

    # Padding only needed when B is not a multiple of 16 (<= 15 rows); for the usual
    # power-of-two batches this branch (and its full-array copy) is skipped entirely.
    if b_pad != B:
        state = jnp.pad(state, ((0, b_pad - B), (0, 0)))
        action = jnp.pad(action, ((0, b_pad - B), (0, 0)))

    num_tiles = b_pad // tb
    grid = (num_tiles,)
    lane_dense = (num_tiles == 1) or (tb % 128 == 0)

    def _tiled(shape):
        return pl.BlockSpec(shape, lambda i: (i, 0))

    def _resident(shape):
        # Constant index_map -> weight/bias block stays VMEM-resident across steps.
        return pl.BlockSpec(shape, lambda i: (0, 0))

    weights = (params["w1"], params["b1"],
               params["w2s"], params["w2a"], params["b2"],
               params["w3"], params["b3"],
               params["w4"], params["b4"],
               params["w5"], params["b5"])

    in_specs = [_tiled((tb, state_size)), _tiled((tb, action_size))]
    in_specs += [_resident(tuple(w.shape)) for w in weights]

    if lane_dense:
        out_shape = jax.ShapeDtypeStruct((1, b_pad), jnp.float32)
        out_spec = pl.BlockSpec((1, tb), lambda i: (0, i))
    else:
        out_shape = jax.ShapeDtypeStruct((b_pad, 1), jnp.float32)
        out_spec = pl.BlockSpec((tb, 1), lambda i: (i, 0))

    flops = 2 * b_pad * (state_size * FC[0] + (FC[0] + action_size) * FC[1]
                         + FC[1] * FC[2] + FC[2] * FC3_PAD + FC3_PAD)
    weight_bytes = sum(int(np.prod(w.shape)) * int(w.dtype.itemsize) for w in weights)
    bytes_accessed = weight_bytes + b_pad * (state_size + action_size + 1) * 4

    kernel = functools.partial(_critic_kernel, lane_dense_out=lane_dense)

    out = pl.pallas_call(
        kernel,
        out_shape=out_shape,
        grid=grid,
        in_specs=in_specs,
        out_specs=out_spec,
        compiler_params=pltpu.CompilerParams(
            dimension_semantics=("parallel",),
            vmem_limit_bytes=(48 * 1024 * 1024 if tb > 1024 else None),
        ),
        cost_estimate=pl.CostEstimate(flops=flops, transcendentals=0,
                                      bytes_accessed=bytes_accessed),
    )(state, action, *weights)

    q = out.reshape(b_pad, 1) if lane_dense else out
    return q[:B]


def init_params(key, state_size, action_size):
    """Deterministic init mirroring Critic.reset_parameters().

    NOTE: hidden_init() in the PyTorch reference uses weight.size()[0], which is
    out_features; we intentionally replicate that quirky limit (do NOT 'fix' it).
    Biases use the nn.Linear default U(-1/sqrt(in_features), 1/sqrt(in_features)).
    Hidden-layer weights are stored [in, out] in bfloat16; fc4/fc5/b4 are zero-padded
    from 64 to 128 columns so the tail of the network runs on full 128-lane vregs;
    fc5 weight is kept f32 as a [1, 128] row for the in-kernel VPU reduction.
    """
    keys = jax.random.split(key, 10)

    def uniform(k, shape, lim):
        return jax.random.uniform(k, shape, jnp.float32, -lim, lim)

    layer_dims = [
        ("1", state_size, FC[0]),
        ("2", FC[0] + action_size, FC[1]),
        ("3", FC[1], FC[2]),
        ("4", FC[2], FC[3]),
        ("5", FC[3], 1),
    ]
    params = {}
    for i, (name, fan_in, fan_out) in enumerate(layer_dims):
        wlim = 0.003 if name == "5" else 1.0 / np.sqrt(fan_out)  # hidden_init quirk
        blim = 1.0 / np.sqrt(fan_in)
        w = uniform(keys[2 * i], (fan_in, fan_out), wlim)        # stored [in, out]
        b = uniform(keys[2 * i + 1], (1, fan_out), blim)
        if name == "2":
            params["w2s"] = w[:FC[0], :].astype(jnp.bfloat16)
            params["w2a"] = w[FC[0]:, :].astype(jnp.bfloat16)
            params["b2"] = b
        elif name == "4":
            wp = jnp.zeros((FC[2], FC3_PAD), jnp.float32).at[:, :FC[3]].set(w)
            bp = jnp.zeros((1, FC3_PAD), jnp.float32).at[:, :FC[3]].set(b)
            params["w4"] = wp.astype(jnp.bfloat16)
            params["b4"] = bp
        elif name == "5":
            w5 = jnp.zeros((1, FC3_PAD), jnp.float32).at[:, :FC[3]].set(w.T)
            params["w5"] = w5                                    # [1, 128] f32 (padded)
            params["b5"] = b                                     # [1, 1]   f32
        else:
            params[f"w{name}"] = w.astype(jnp.bfloat16)
            params[f"b{name}"] = b
    return params


def _reference_forward(state, action, params):
    """Pure-JAX reference (f32 math on the same bf16-stored weights).

    The zero-padded fc4/fc5 columns contribute nothing, so using the padded
    parameters here is mathematically identical to the unpadded network.
    """
    f32 = lambda w: w.astype(jnp.float32)
    xs = jnp.maximum(state @ f32(params["w1"]) + params["b1"], 0.0)
    x = jnp.concatenate([xs, action], axis=1)
    w2 = jnp.concatenate([f32(params["w2s"]), f32(params["w2a"])], axis=0)
    x = jnp.maximum(x @ w2 + params["b2"], 0.0)
    x = jnp.maximum(x @ f32(params["w3"]) + params["b3"], 0.0)
    x = jnp.maximum(x @ f32(params["w4"]) + params["b4"], 0.0)
    return x @ params["w5"].T + params["b5"]


if __name__ == "__main__":
    state_size = 32
    action_size = 8

    key = jax.random.PRNGKey(0)
    k_params, k_state, k_action = jax.random.split(key, 3)
    params = init_params(k_params, state_size, action_size)

    # bf16 activations/weights inside the kernel -> relaxed tolerance vs. f32 reference.
    RTOL, ATOL = 2e-2, 1e-2

    # Case 1: tiny batch, single grid step, lane-dense [1, tb] output block.
    B = 8
    state = jax.random.normal(k_state, (B, state_size), jnp.float32)
    action = jax.random.normal(k_action, (B, action_size), jnp.float32)
    q = critic_forward(state, action, params)
    jax.block_until_ready(q)
    q_ref = _reference_forward(state, action, params)
    np.testing.assert_allclose(np.asarray(q), np.asarray(q_ref), rtol=RTOL, atol=ATOL)
    assert q.shape == (B, 1)

    # Case 2: batch not a multiple of 16 -> exercises the (<=15-row) padding path and
    # the multi-step grid with the safe column-output fallback (tb=16 not lane-dense).
    B2 = 20
    k_s2, k_a2 = jax.random.split(jax.random.PRNGKey(1))
    state2 = jax.random.normal(k_s2, (B2, state_size), jnp.float32)
    action2 = jax.random.normal(k_a2, (B2, action_size), jnp.float32)
    q2 = critic_forward(state2, action2, params, block_b=16)
    jax.block_until_ready(q2)
    q2_ref = _reference_forward(state2, action2, params)
    np.testing.assert_allclose(np.asarray(q2), np.asarray(q2_ref), rtol=RTOL, atol=ATOL)
    assert q2.shape == (B2, 1)

    # Case 3: multi-tile grid with 128-row tiles -> lane-dense output blocks across steps.
    B3 = 256
    k_s3, k_a3 = jax.random.split(jax.random.PRNGKey(2))
    state3 = jax.random.normal(k_s3, (B3, state_size), jnp.float32)
    action3 = jax.random.normal(k_a3, (B3, action_size), jnp.float32)
    q3 = critic_forward(state3, action3, params, block_b=128)
    jax.block_until_ready(q3)
    q3_ref = _reference_forward(state3, action3, params)
    np.testing.assert_allclose(np.asarray(q3), np.asarray(q3_ref), rtol=RTOL, atol=ATOL)
    assert q3.shape == (B3, 1)

    print("KERNEL_OK")
</pallas_src>

<mosaic_0001>
module attributes {stable_mosaic.version = 11 : i64} {
  func.func @_critic_kernel(%arg0: i32, %arg1: memref<16x32xf32, #tpu.memory_space<vmem>>, %arg2: memref<16x8xf32, #tpu.memory_space<vmem>>, %arg3: memref<32x512xbf16, #tpu.memory_space<vmem>>, %arg4: memref<1x512xf32, #tpu.memory_space<vmem>>, %arg5: memref<512x256xbf16, #tpu.memory_space<vmem>>, %arg6: memref<8x256xbf16, #tpu.memory_space<vmem>>, %arg7: memref<1x256xf32, #tpu.memory_space<vmem>>, %arg8: memref<256x128xbf16, #tpu.memory_space<vmem>>, %arg9: memref<1x128xf32, #tpu.memory_space<vmem>>, %arg10: memref<128x128xbf16, #tpu.memory_space<vmem>>, %arg11: memref<1x128xf32, #tpu.memory_space<vmem>>, %arg12: memref<1x128xf32, #tpu.memory_space<vmem>>, %arg13: memref<1x1xf32, #tpu.memory_space<vmem>>, %arg14: memref<1x16xf32, #tpu.memory_space<vmem>>) attributes {dimension_semantics = [#tpu.dimension_semantics<parallel>], iteration_bounds = array<i64: 1>, scalar_prefetch = 0 : i64, scratch_operands = 0 : i64, tpu.core_type = #tpu.core_type<tc>, window_params = [{transform_indices = @transform_0, window_bounds = array<i64: 16, 32>}, {transform_indices = @transform_1, window_bounds = array<i64: 16, 8>}, {pipeline_mode = #tpu.pipeline_mode<synchronous>, transform_indices = @transform_2, window_bounds = array<i64: 32, 512>}, {pipeline_mode = #tpu.pipeline_mode<synchronous>, transform_indices = @transform_3, window_bounds = array<i64: 1, 512>}, {pipeline_mode = #tpu.pipeline_mode<synchronous>, transform_indices = @transform_4, window_bounds = array<i64: 512, 256>}, {pipeline_mode = #tpu.pipeline_mode<synchronous>, transform_indices = @transform_5, window_bounds = array<i64: 8, 256>}, {pipeline_mode = #tpu.pipeline_mode<synchronous>, transform_indices = @transform_6, window_bounds = array<i64: 1, 256>}, {pipeline_mode = #tpu.pipeline_mode<synchronous>, transform_indices = @transform_7, window_bounds = array<i64: 256, 128>}, {pipeline_mode = #tpu.pipeline_mode<synchronous>, transform_indices = @transform_8, window_bounds = array<i64: 1, 128>}, {pipeline_mode = #tpu.pipeline_mode<synchronous>, transform_indices = @transform_9, window_bounds = array<i64: 128, 128>}, {pipeline_mode = #tpu.pipeline_mode<synchronous>, transform_indices = @transform_10, window_bounds = array<i64: 1, 128>}, {pipeline_mode = #tpu.pipeline_mode<synchronous>, transform_indices = @transform_11, window_bounds = array<i64: 1, 128>}, {pipeline_mode = #tpu.pipeline_mode<synchronous>, transform_indices = @transform_12, window_bounds = array<i64: 1, 1>}, {transform_indices = @transform_13, window_bounds = array<i64: 1, 16>}]} {
    %c0 = arith.constant 0 : index
    %c0_0 = arith.constant 0 : index
    %0 = vector.load %arg1[%c0, %c0_0] : memref<16x32xf32, #tpu.memory_space<vmem>>, vector<16x32xf32>
    %1 = arith.truncf %0 : vector<16x32xf32> to vector<16x32xbf16>
    %c0_1 = arith.constant 0 : index
    %c0_2 = arith.constant 0 : index
    %2 = vector.load %arg2[%c0_1, %c0_2] : memref<16x8xf32, #tpu.memory_space<vmem>>, vector<16x8xf32>
    %3 = arith.truncf %2 : vector<16x8xf32> to vector<16x8xbf16>
    %c0_3 = arith.constant 0 : index
    %c0_4 = arith.constant 0 : index
    %4 = vector.load %arg3[%c0_3, %c0_4] : memref<32x512xbf16, #tpu.memory_space<vmem>>, vector<32x512xbf16>
    %cst = arith.constant dense<0.000000e+00> : vector<16x512xf32>
    %5 = tpu.matmul %1, %4, %cst {dimension_numbers = #tpu.dot_dimension_numbers<[1], [0], [0], [1], [0, 0, 1, 1], [], []>} : vector<16x32xbf16>, vector<32x512xbf16>, vector<16x512xf32> -> vector<16x512xf32>
    %c0_5 = arith.constant 0 : index
    %c0_6 = arith.constant 0 : index
    %6 = vector.load %arg4[%c0_5, %c0_6] : memref<1x512xf32, #tpu.memory_space<vmem>>, vector<1x512xf32>
    %7 = vector.broadcast %6 : vector<1x512xf32> to vector<16x512xf32>
    %8 = arith.addf %5, %7 : vector<16x512xf32>
    %cst_7 = arith.constant 0.000000e+00 : f32
    %9 = vector.broadcast %cst_7 : f32 to vector<16x512xf32>
    %10 = arith.maximumf %8, %9 : vector<16x512xf32>
    %11 = arith.truncf %10 : vector<16x512xf32> to vector<16x512xbf16>
    %c0_8 = arith.constant 0 : index
    %c0_9 = arith.constant 0 : index
    %12 = vector.load %arg5[%c0_8, %c0_9] : memref<512x256xbf16, #tpu.memory_space<vmem>>, vector<512x256xbf16>
    %cst_10 = arith.constant dense<0.000000e+00> : vector<16x256xf32>
    %13 = tpu.matmul %11, %12, %cst_10 {dimension_numbers = #tpu.dot_dimension_numbers<[1], [0], [0], [1], [0, 0, 1, 1], [], []>} : vector<16x512xbf16>, vector<512x256xbf16>, vector<16x256xf32> -> vector<16x256xf32>
    %c0_11 = arith.constant 0 : index
    %c0_12 = arith.constant 0 : index
    %14 = vector.load %arg6[%c0_11, %c0_12] : memref<8x256xbf16, #tpu.memory_space<vmem>>, vector<8x256xbf16>
    %cst_13 = arith.constant dense<0.000000e+00> : vector<16x256xf32>
    %15 = tpu.matmul %3, %14, %cst_13 {dimension_numbers = #tpu.dot_dimension_numbers<[1], [0], [0], [1], [0, 0, 1, 1], [], []>} : vector<16x8xbf16>, vector<8x256xbf16>, vector<16x256xf32> -> vector<16x256xf32>
    %16 = arith.addf %13, %15 : vector<16x256xf32>
    %c0_14 = arith.constant 0 : index
    %c0_15 = arith.constant 0 : index
    %17 = vector.load %arg7[%c0_14, %c0_15] : memref<1x256xf32, #tpu.memory_space<vmem>>, vector<1x256xf32>
    %18 = vector.broadcast %17 : vector<1x256xf32> to vector<16x256xf32>
    %19 = arith.addf %16, %18 : vector<16x256xf32>
    %cst_16 = arith.constant 0.000000e+00 : f32
    %20 = vector.broadcast %cst_16 : f32 to vector<16x256xf32>
    %21 = arith.maximumf %19, %20 : vector<16x256xf32>
    %22 = arith.truncf %21 : vector<16x256xf32> to vector<16x256xbf16>
    %c0_17 = arith.constant 0 : index
    %c0_18 = arith.constant 0 : index
    %23 = vector.load %arg8[%c0_17, %c0_18] : memref<256x128xbf16, #tpu.memory_space<vmem>>, vector<256x128xbf16>
    %cst_19 = arith.constant dense<0.000000e+00> : vector<16x128xf32>
    %24 = tpu.matmul %22, %23, %cst_19 {dimension_numbers = #tpu.dot_dimension_numbers<[1], [0], [0], [1], [0, 0, 1, 1], [], []>} : vector<16x256xbf16>, vector<256x128xbf16>, vector<16x128xf32> -> vector<16x128xf32>
    %c0_20 = arith.constant 0 : index
    %c0_21 = arith.constant 0 : index
    %25 = vector.load %arg9[%c0_20, %c0_21] : memref<1x128xf32, #tpu.memory_space<vmem>>, vector<1x128xf32>
    %26 = vector.broadcast %25 : vector<1x128xf32> to vector<16x128xf32>
    %27 = arith.addf %24, %26 : vector<16x128xf32>
    %cst_22 = arith.constant 0.000000e+00 : f32
    %28 = vector.broadcast %cst_22 : f32 to vector<16x128xf32>
    %29 = arith.maximumf %27, %28 : vector<16x128xf32>
    %30 = arith.truncf %29 : vector<16x128xf32> to vector<16x128xbf16>
    %c0_23 = arith.constant 0 : index
    %c0_24 = arith.constant 0 : index
    %31 = vector.load %arg10[%c0_23, %c0_24] : memref<128x128xbf16, #tpu.memory_space<vmem>>, vector<128x128xbf16>
    %cst_25 = arith.constant dense<0.000000e+00> : vector<16x128xf32>
    %32 = tpu.matmul %30, %31, %cst_25 {dimension_numbers = #tpu.dot_dimension_numbers<[1], [0], [0], [1], [0, 0, 1, 1], [], []>} : vector<16x128xbf16>, vector<128x128xbf16>, vector<16x128xf32> -> vector<16x128xf32>
    %c0_26 = arith.constant 0 : index
    %c0_27 = arith.constant 0 : index
    %33 = vector.load %arg11[%c0_26, %c0_27] : memref<1x128xf32, #tpu.memory_space<vmem>>, vector<1x128xf32>
    %34 = vector.broadcast %33 : vector<1x128xf32> to vector<16x128xf32>
    %35 = arith.addf %32, %34 : vector<16x128xf32>
    %cst_28 = arith.constant 0.000000e+00 : f32
    %36 = vector.broadcast %cst_28 : f32 to vector<16x128xf32>
    %37 = arith.maximumf %35, %36 : vector<16x128xf32>
    %c0_29 = arith.constant 0 : index
    %c0_30 = arith.constant 0 : index
    %38 = vector.load %arg12[%c0_29, %c0_30] : memref<1x128xf32, #tpu.memory_space<vmem>>, vector<1x128xf32>
    %39 = vector.broadcast %38 : vector<1x128xf32> to vector<16x128xf32>
    %40 = arith.mulf %37, %39 : vector<16x128xf32>
    %cst_31 = arith.constant dense<0.000000e+00> : vector<16xf32>
    %41 = vector.multi_reduction <add>, %40, %cst_31 [1] : vector<16x128xf32> to vector<16xf32>
    %42 = vector.shape_cast %41 : vector<16xf32> to vector<16x1xf32>
    %c0_32 = arith.constant 0 : index
    %c0_33 = arith.constant 0 : index
    %43 = vector.load %arg13[%c0_32, %c0_33] : memref<1x1xf32, #tpu.memory_space<vmem>>, vector<1x1xf32>
    %44 = vector.broadcast %43 : vector<1x1xf32> to vector<16x1xf32>
    %45 = arith.addf %42, %44 : vector<16x1xf32>
    %46 = vector.shape_cast %45 : vector<16x1xf32> to vector<1x16xf32>
    %c0_34 = arith.constant 0 : index
    %c0_35 = arith.constant 0 : index
    %47 = vector.load %arg14[%c0_34, %c0_35] : memref<1x16xf32, #tpu.memory_space<vmem>>, vector<1x16xf32>
    tpu.vector_store %arg14[%c0_34, %c0_35], %46 {strides = array<i32>} : memref<1x16xf32, #tpu.memory_space<vmem>>, vector<1x16xf32>,
    return
  }
  func.func @transform_0(%arg0: i32) -> (i32, i32) {
    %c0_i32 = arith.constant 0 : i32
    %c0_i32_0 = arith.constant 0 : i32
    return %arg0, %c0_i32 : i32, i32
  }
  func.func @transform_1(%arg0: i32) -> (i32, i32) {
    %c0_i32 = arith.constant 0 : i32
    %c0_i32_0 = arith.constant 0 : i32
    return %arg0, %c0_i32 : i32, i32
  }
  func.func @transform_2(%arg0: i32) -> (i32, i32) {
    %c0_i32 = arith.constant 0 : i32
    %c0_i32_0 = arith.constant 0 : i32
    %c0_i32_1 = arith.constant 0 : i32
    return %c0_i32, %c0_i32_0 : i32, i32
  }
  func.func @transform_3(%arg0: i32) -> (i32, i32) {
    %c0_i32 = arith.constant 0 : i32
    %c0_i32_0 = arith.constant 0 : i32
    %c0_i32_1 = arith.constant 0 : i32
    return %c0_i32, %c0_i32_0 : i32, i32
  }
  func.func @transform_4(%arg0: i32) -> (i32, i32) {
    %c0_i32 = arith.constant 0 : i32
    %c0_i32_0 = arith.constant 0 : i32
    %c0_i32_1 = arith.constant 0 : i32
    return %c0_i32, %c0_i32_0 : i32, i32
  }
  func.func @transform_5(%arg0: i32) -> (i32, i32) {
    %c0_i32 = arith.constant 0 : i32
    %c0_i32_0 = arith.constant 0 : i32
    %c0_i32_1 = arith.constant 0 : i32
    return %c0_i32, %c0_i32_0 : i32, i32
  }
  func.func @transform_6(%arg0: i32) -> (i32, i32) {
    %c0_i32 = arith.constant 0 : i32
    %c0_i32_0 = arith.constant 0 : i32
    %c0_i32_1 = arith.constant 0 : i32
    return %c0_i32, %c0_i32_0 : i32, i32
  }
  func.func @transform_7(%arg0: i32) -> (i32, i32) {
    %c0_i32 = arith.constant 0 : i32
    %c0_i32_0 = arith.constant 0 : i32
    %c0_i32_1 = arith.constant 0 : i32
    return %c0_i32, %c0_i32_0 : i32, i32
  }
  func.func @transform_8(%arg0: i32) -> (i32, i32) {
    %c0_i32 = arith.constant 0 : i32
    %c0_i32_0 = arith.constant 0 : i32
    %c0_i32_1 = arith.constant 0 : i32
    return %c0_i32, %c0_i32_0 : i32, i32
  }
  func.func @transform_9(%arg0: i32) -> (i32, i32) {
    %c0_i32 = arith.constant 0 : i32
    %c0_i32_0 = arith.constant 0 : i32
    %c0_i32_1 = arith.constant 0 : i32
    return %c0_i32, %c0_i32_0 : i32, i32
  }
  func.func @transform_10(%arg0: i32) -> (i32, i32) {
    %c0_i32 = arith.constant 0 : i32
    %c0_i32_0 = arith.constant 0 : i32
    %c0_i32_1 = arith.constant 0 : i32
    return %c0_i32, %c0_i32_0 : i32, i32
  }
  func.func @transform_11(%arg0: i32) -> (i32, i32) {
    %c0_i32 = arith.constant 0 : i32
    %c0_i32_0 = arith.constant 0 : i32
    %c0_i32_1 = arith.constant 0 : i32
    return %c0_i32, %c0_i32_0 : i32, i32
  }
  func.func @transform_12(%arg0: i32) -> (i32, i32) {
    %c0_i32 = arith.constant 0 : i32
    %c0_i32_0 = arith.constant 0 : i32
    %c0_i32_1 = arith.constant 0 : i32
    return %c0_i32, %c0_i32_0 : i32, i32
  }
  func.func @transform_13(%arg0: i32) -> (i32, i32) {
    %c0_i32 = arith.constant 0 : i32
    %c0_i32_0 = arith.constant 0 : i32
    return %c0_i32, %arg0 : i32, i32
  }
}

</mosaic_0001>

<llo_original>
// kernel: tpu_custom_call.1
$region0: #{tpu_custom_call.1}
  #allocation0 [shape = 'u32[]', space=smem, size = 0x4, offset = 0x4, fixed_abs, tag = 'smem constant byte address 0x4 - core index']
  #allocation1 [shape = 'u32[144,128]{1,0:T(1,128)}', space=vmem, size = 0x12000, scoped, tag = 'internal scratch']
  #allocation2 [shape = 'f32[1,1]{1,0:T(1,128)S(1)}', space=vmem, size = 0x200, scoped, tag = 'scoped memory for tpu_custom_call.1']
  %s0 = inlined_call_operand.vmem [shape: f32[16,32], index: 0, kind: input, shape index: {}]
  %s1 = inlined_call_operand.vmem [shape: f32[16,8], index: 1, kind: input, shape index: {}]
  %s2 = inlined_call_operand.hbm [shape: bf16[32,512], index: 2, kind: input, shape index: {}]
  %s3 = inlined_call_operand.vmem [shape: f32[1,512], index: 3, kind: input, shape index: {}]
  %s4 = inlined_call_operand.hbm [shape: bf16[512,256], index: 4, kind: input, shape index: {}]
  %s5 = inlined_call_operand.vmem [shape: bf16[8,256], index: 5, kind: input, shape index: {}]
  %s6 = inlined_call_operand.vmem [shape: f32[1,256], index: 6, kind: input, shape index: {}]
  %s7 = inlined_call_operand.hbm [shape: bf16[256,128], index: 7, kind: input, shape index: {}]
  %s8 = inlined_call_operand.vmem [shape: f32[1,128], index: 8, kind: input, shape index: {}]
  %s9 = inlined_call_operand.hbm [shape: bf16[128,128], index: 9, kind: input, shape index: {}]
  %s10 = inlined_call_operand.vmem [shape: f32[1,128], index: 10, kind: input, shape index: {}]
  %s11 = inlined_call_operand.vmem [shape: f32[1,128], index: 11, kind: input, shape index: {}]
  %s12 = inlined_call_operand.<no memory space> [shape: f32[1,1], index: 12, kind: input, shape index: {}]
  %s13 = inlined_call_operand.hbm [shape: f32[1,16], index: 13, kind: output, shape index: {}]
  %s14 = sld [smem:[#allocation0]]
  $region78: #{tpu_custom_call.1} parent=0
    _
  %s16 = ssub.s32 1, %s14
  %s17 = scalar_select 0, %s16, %s14
  %v18 = vstv %s12
  %19 = vst [vmem:[#allocation2] sm:$0x1] %v18
  $region1: #{tpu_custom_call.1} parent=0
    #allocation3 [shape = 'u8[32768]{0}', space=vmem, size = 0x8000, scoped, tag = 'input window, operand 2, single buffered']
    #allocation4 [shape = 's32[1]{0}', space=sflag, size = 0x4, scoped, tag = 'scoped memory for tpu_custom_call.1']
    #allocation5 [shape = 's32[1]{0}', space=sflag, size = 0x4, scoped, tag = 'scoped memory for tpu_custom_call.1']
    #allocation6 [shape = 'u8[262144]{0}', space=vmem, size = 0x40000, scoped, tag = 'input window, operand 4, single buffered']
    #allocation7 [shape = 's32[1]{0}', space=sflag, size = 0x4, scoped, tag = 'scoped memory for tpu_custom_call.1']
    #allocation8 [shape = 'u8[65536]{0}', space=vmem, size = 0x10000, scoped, tag = 'input window, operand 7, single buffered']
    #allocation9 [shape = 'u8[32768]{0}', space=vmem, size = 0x8000, scoped, tag = 'input window, operand 9, single buffered']
    #allocation10 [shape = 's32[1]{0}', space=sflag, size = 0x4, scoped, tag = 'scoped memory for tpu_custom_call.1']
    #allocation11 [shape = 'u8[512]{0}', space=vmem, size = 0x400, scoped, tag = 'output window, operand 0, single buffered']
    %20 = vsyncpa [#allocation4], 0
    %21 = vsyncpa [#allocation7], 0
    %22 = vsyncpa [#allocation10], 0
    %23 = vsyncpa [#allocation5], 0
    // Predicated region
    $region2: #{tpu_custom_call.1} parent=1 // pred_check
      _
    $region3: #{tpu_custom_call.1} parent=1 // pred_check_branch
      %25 = sbr.rel (0) target = $region5
    $region4: #{tpu_custom_call.1} parent=1 // pred_region
      _
    $region5: #{tpu_custom_call.1} parent=1 // pred_fallthru
      _
    // Predicated region
    $region6: #{tpu_custom_call.1} parent=1 // pred_check
      _
    $region7: #{tpu_custom_call.1} parent=1 // pred_check_branch
      %27 = sbr.rel (0) target = $region9
    $region8: #{tpu_custom_call.1} parent=1 // pred_region
      _
    $region9: #{tpu_custom_call.1} parent=1 // pred_fallthru
      _
    // Predicated region
    $region10: #{tpu_custom_call.1} parent=1 // pred_check
      _
    $region11: #{tpu_custom_call.1} parent=1 // pred_check_branch
      %29 = sbr.rel (0) target = $region13
    $region12: #{tpu_custom_call.1} parent=1 // pred_region
      %s31 = ssub.s32 1024, 1024
      %32 = vsyncadd [#allocation4], %s31
      %s33 = sshll.u32 [#allocation3], 4
      %s34 = int_to_ptr.vmem [resolvable:$true] %s33
      %39 = dma.hbm_to_vmem [thread:$0]  %s2, 1024, %s34, [#allocation4], 256, 256, 16
    $region13: #{tpu_custom_call.1} parent=1 // pred_fallthru
      _
    // Predicated region
    $region14: #{tpu_custom_call.1} parent=1 // pred_check
      _
    $region15: #{tpu_custom_call.1} parent=1 // pred_check_branch
      %41 = sbr.rel (0) target = $region17
    $region16: #{tpu_custom_call.1} parent=1 // pred_region
      _
    $region17: #{tpu_custom_call.1} parent=1 // pred_fallthru
      _
    // Predicated region
    $region18: #{tpu_custom_call.1} parent=1 // pred_check
      _
    $region19: #{tpu_custom_call.1} parent=1 // pred_check_branch
      %43 = sbr.rel (0) target = $region21
    $region20: #{tpu_custom_call.1} parent=1 // pred_region
      %s45 = ssub.s32 8192, 8192
      %46 = vsyncadd [#allocation7], %s45
      %s47 = sshll.u32 [#allocation6], 4
      %s48 = int_to_ptr.vmem [resolvable:$true] %s47
      %53 = dma.hbm_to_vmem [thread:$0]  %s4, 8192, %s48, [#allocation7], 128, 128, 8
    $region21: #{tpu_custom_call.1} parent=1 // pred_fallthru
      _
    // Predicated region
    $region22: #{tpu_custom_call.1} parent=1 // pred_check
      _
    $region23: #{tpu_custom_call.1} parent=1 // pred_check_branch
      %55 = sbr.rel (0) target = $region25
    $region24: #{tpu_custom_call.1} parent=1 // pred_region
      _
    $region25: #{tpu_custom_call.1} parent=1 // pred_fallthru
      _
    // Predicated region
    $region26: #{tpu_custom_call.1} parent=1 // pred_check
      _
    $region27: #{tpu_custom_call.1} parent=1 // pred_check_branch
      %57 = sbr.rel (0) target = $region29
    $region28: #{tpu_custom_call.1} parent=1 // pred_region
      _
    $region29: #{tpu_custom_call.1} parent=1 // pred_fallthru
      _
    // Predicated region
    $region30: #{tpu_custom_call.1} parent=1 // pred_check
      _
    $region31: #{tpu_custom_call.1} parent=1 // pred_check_branch
      %59 = sbr.rel (0) target = $region33
    $region32: #{tpu_custom_call.1} parent=1 // pred_region
      %s61 = ssub.s32 2048, 2048
      %62 = vsyncadd [#allocation7], %s61
      %s63 = sshll.u32 [#allocation8], 4
      %s64 = int_to_ptr.vmem [resolvable:$true] %s63
      %69 = dma.hbm_to_vmem [thread:$0]  %s7, 2048, %s64, [#allocation7], 64, 64, 4
    $region33: #{tpu_custom_call.1} parent=1 // pred_fallthru
      _
    // Predicated region
    $region34: #{tpu_custom_call.1} parent=1 // pred_check
      _
    $region35: #{tpu_custom_call.1} parent=1 // pred_check_branch
      %71 = sbr.rel (0) target = $region37
    $region36: #{tpu_custom_call.1} parent=1 // pred_region
      _
    $region37: #{tpu_custom_call.1} parent=1 // pred_fallthru
      _
    // Predicated region
    $region38: #{tpu_custom_call.1} parent=1 // pred_check
      _
    $region39: #{tpu_custom_call.1} parent=1 // pred_check_branch
      %73 = sbr.rel (0) target = $region41
    $region40: #{tpu_custom_call.1} parent=1 // pred_region
      %s75 = ssub.s32 1024, 1024
      %76 = vsyncadd [#allocation10], %s75
      %s77 = sshll.u32 [#allocation9], 4
      %s78 = int_to_ptr.vmem [resolvable:$true] %s77
      %83 = dma.hbm_to_vmem [thread:$0]  %s9, 1024, %s78, [#allocation10], 64, 64, 4
    $region41: #{tpu_custom_call.1} parent=1 // pred_fallthru
      _
    // Predicated region
    $region42: #{tpu_custom_call.1} parent=1 // pred_check
      _
    $region43: #{tpu_custom_call.1} parent=1 // pred_check_branch
      %85 = sbr.rel (0) target = $region45
    $region44: #{tpu_custom_call.1} parent=1 // pred_region
      _
    $region45: #{tpu_custom_call.1} parent=1 // pred_fallthru
      _
    // Predicated region
    $region46: #{tpu_custom_call.1} parent=1 // pred_check
      _
    $region47: #{tpu_custom_call.1} parent=1 // pred_check_branch
      %87 = sbr.rel (0) target = $region49
    $region48: #{tpu_custom_call.1} parent=1 // pred_region
      _
    $region49: #{tpu_custom_call.1} parent=1 // pred_fallthru
      _
    // Predicated region
    $region50: #{tpu_custom_call.1} parent=1 // pred_check
      _
    $region51: #{tpu_custom_call.1} parent=1 // pred_check_branch
      %89 = sbr.rel (0) target = $region53
    $region52: #{tpu_custom_call.1} parent=1 // pred_region
      _
    $region53: #{tpu_custom_call.1} parent=1 // pred_fallthru
      _
    // Predicated region
    $region54: #{tpu_custom_call.1} parent=1 // pred_check
      _
    $region55: #{tpu_custom_call.1} parent=1 // pred_check_branch
      %91 = sbr.rel (0) target = $region57
    $region56: #{tpu_custom_call.1} parent=1 // pred_region
      %92 = dma.done [#allocation4], 1024
    $region57: #{tpu_custom_call.1} parent=1 // pred_fallthru
      _
    // Predicated region
    $region58: #{tpu_custom_call.1} parent=1 // pred_check
      _
    $region59: #{tpu_custom_call.1} parent=1 // pred_check_branch
      %94 = sbr.rel (0) target = $region61
    $region60: #{tpu_custom_call.1} parent=1 // pred_region
      %95 = dma.done [#allocation7], 8192
    $region61: #{tpu_custom_call.1} parent=1 // pred_fallthru
      _
    // Predicated region
    $region62: #{tpu_custom_call.1} parent=1 // pred_check
      _
    $region63: #{tpu_custom_call.1} parent=1 // pred_check_branch
      %97 = sbr.rel (0) target = $region65
    $region64: #{tpu_custom_call.1} parent=1 // pred_region
      %98 = dma.done [#allocation7], 2048
    $region65: #{tpu_custom_call.1} parent=1 // pred_fallthru
      _
    // Predicated region
    $region66: #{tpu_custom_call.1} parent=1 // pred_check
      _
    $region67: #{tpu_custom_call.1} parent=1 // pred_check_branch
      %100 = sbr.rel (0) target = $region69
    $region68: #{tpu_custom_call.1} parent=1 // pred_region
      %101 = dma.done [#allocation10], 1024
    $region69: #{tpu_custom_call.1} parent=1 // pred_fallthru
      _
    %v103 = vld [vmem:[%s0] sm:$0xff]
    %v104 = vld [vmem:[%s0 + $0x8] sm:$0xff]
    %v105 = vpack.c.bf16 %v104, %v103
    %v106 = vld [vmem:[%s1] sm:$0xff]
    %v107 = vld [vmem:[%s1 + $0x8] sm:$0xff]
    %v108 = vpack.c.bf16 %v107, %v106
    %v109 = vld [vmem:[#allocation3] sm:$0xff]
    %v110 = vld [vmem:[#allocation3 + $0x8] sm:$0xff]
    %v111 = vld [vmem:[#allocation3 + $0x10] sm:$0xff]
    %v112 = vld [vmem:[#allocation3 + $0x18] sm:$0xff]
    %v113 = vld [vmem:[#allocation3 + $0x20] sm:$0xff]
    %v114 = vld [vmem:[#allocation3 + $0x28] sm:$0xff]
    %v115 = vld [vmem:[#allocation3 + $0x30] sm:$0xff]
    %v116 = vld [vmem:[#allocation3 + $0x38] sm:$0xff]
    %v117 = vld [vmem:[%s3] sm:$0xf]
    %v119 = vlaneseq
    %v120 = vshrl.u32 %v119, 7
    %v121 = vsub.s32 0, %v120
    %v122 = vrot.slane %v117, %v121
    %v123 = vlaneseq
    %v124 = vshrl.u32 %v123, 7
    %v125 = vsub.s32 1, %v124
    %v126 = vrot.slane %v117, %v125
    %v127 = vlaneseq
    %v128 = vshrl.u32 %v127, 7
    %v129 = vsub.s32 2, %v128
    %v130 = vrot.slane %v117, %v129
    %v131 = vlaneseq
    %v132 = vshrl.u32 %v131, 7
    %v133 = vsub.s32 3, %v132
    %v134 = vrot.slane %v117, %v133
    %v147 = vunpack.c.l.b16 %v109
    %v148 = vunpack.c.h.b16 %v109
    %v149 = vunpack.c.l.b16 %v110
    %v150 = vunpack.c.h.b16 %v110
    %v151 = vunpack.c.l.b16 %v111
    %v152 = vunpack.c.h.b16 %v111
    %v153 = vunpack.c.l.b16 %v112
    %v154 = vunpack.c.h.b16 %v112
    %v155 = vunpack.c.l.b16 %v113
    %v156 = vunpack.c.h.b16 %v113
    %v157 = vunpack.c.l.b16 %v114
    %v158 = vunpack.c.h.b16 %v114
    %v159 = vunpack.c.l.b16 %v115
    %v160 = vunpack.c.h.b16 %v115
    %v161 = vunpack.c.l.b16 %v116
    %v162 = vunpack.c.h.b16 %v116
    %v163 = vpack.c.b16 %v151, %v147
    %v164 = vpack.c.b16 %v152, %v148
    %v165 = vpack.c.b16 %v153, %v149
    %v166 = vpack.c.b16 %v154, %v150
    %v167 = vpack.c.b16 %v159, %v155
    %v168 = vpack.c.b16 %v160, %v156
    %v169 = vpack.c.b16 %v161, %v157
    %v170 = vpack.c.b16 %v162, %v158
    %vm179 = vcmask 261120
    %v181 = vsel %vm179, %v105, 0
    %183 = vmatprep.subr.bf16.mxu0 %v164
    %184 = vmatpush1.bf16.msra.mxu0 %v163
    %185 = vmatprep.subr.bf16.mxu0 %v168
    %186 = vmatpush1.bf16.msra.mxu0 %v167
    %187 = vmatprep.subr.bf16.mxu0 0
    %188 = vmatpush1.bf16.msra.mxu0 0
    %189 = vmatprep.subr.bf16.mxu0 0
    %190 = vmatpush1.bf16.msra.mxu0 0
    %191 = vmatprep.subr.bf16.mxu0 0
    %192 = vmatpush1.bf16.msra.mxu0 0
    %193 = vmatprep.subr.bf16.mxu0 0
    %194 = vmatpush1.bf16.msra.mxu0 0
    %195 = vmatprep.subr.bf16.mxu0 0
    %196 = vmatpush1.bf16.msra.mxu0 0
    %197 = vmatprep.subr.bf16.mxu0 0
    %198 = vmatpush1.bf16.msra.mxu0 0
    %199 = vmatprep.subr.bf16.mxu0 0
    %200 = vmatpush1.bf16.msra.mxu0 0
    %201 = vmatprep.subr.bf16.mxu0 0
    %202 = vmatpush1.bf16.msra.mxu0 0
    %203 = vmatprep.subr.bf16.mxu0 0
    %204 = vmatpush1.bf16.msra.mxu0 0
    %205 = vmatprep.subr.bf16.mxu0 0
    %206 = vmatpush1.bf16.msra.mxu0 0
    %207 = vmatprep.subr.bf16.mxu0 0
    %208 = vmatpush1.bf16.msra.mxu0 0
    %209 = vmatprep.subr.bf16.mxu0 0
    %210 = vmatpush1.bf16.msra.mxu0 0
    %211 = vmatprep.subr.bf16.mxu0 0
    %212 = vmatpush1.bf16.msra.mxu0 0
    %213 = vmatprep.subr.bf16.mxu0 0
    %214 = vmatpush1.bf16.msra.mxu0 0
    %215 = vmatprep.mubr.bf16.mxu0 0
    %216 = vmatmul.mubr.bf16.gmra.mrb[0].mxu0 %v181
    %v217 = vpop.f32.mrb[0].mxu0
    %v218 = vadd.f32 %v122, %v217
    %v219 = vpop.f32.mrb[0].mxu0
    %v220 = vadd.f32 %v126, %v219
    %v221 = vpop.f32.mrb[0].mxu0
    %v222 = vadd.f32 %v122, %v221
    %v223 = vpop.f32.mrb[0].mxu0
    %v224 = vadd.f32 %v126, %v223
    %225 = vdwg.mxu0
    %226 = vmatprep.subr.bf16.mxu0 %v166
    %227 = vmatpush1.bf16.msra.mxu0 %v165
    %228 = vmatprep.subr.bf16.mxu0 %v170
    %229 = vmatpush1.bf16.msra.mxu0 %v169
    %230 = vmatprep.subr.bf16.mxu0 0
    %231 = vmatpush1.bf16.msra.mxu0 0
    %232 = vmatprep.subr.bf16.mxu0 0
    %233 = vmatpush1.bf16.msra.mxu0 0
    %234 = vmatprep.subr.bf16.mxu0 0
    %235 = vmatpush1.bf16.msra.mxu0 0
    %236 = vmatprep.subr.bf16.mxu0 0
    %237 = vmatpush1.bf16.msra.mxu0 0
    %238 = vmatprep.subr.bf16.mxu0 0
    %239 = vmatpush1.bf16.msra.mxu0 0
    %240 = vmatprep.subr.bf16.mxu0 0
    %241 = vmatpush1.bf16.msra.mxu0 0
    %242 = vmatprep.subr.bf16.mxu0 0
    %243 = vmatpush1.bf16.msra.mxu0 0
    %244 = vmatprep.subr.bf16.mxu0 0
    %245 = vmatpush1.bf16.msra.mxu0 0
    %246 = vmatprep.subr.bf16.mxu0 0
    %247 = vmatpush1.bf16.msra.mxu0 0
    %248 = vmatprep.subr.bf16.mxu0 0
    %249 = vmatpush1.bf16.msra.mxu0 0
    %250 = vmatprep.subr.bf16.mxu0 0
    %251 = vmatpush1.bf16.msra.mxu0 0
    %252 = vmatprep.subr.bf16.mxu0 0
    %253 = vmatpush1.bf16.msra.mxu0 0
    %254 = vmatprep.subr.bf16.mxu0 0
    %255 = vmatpush1.bf16.msra.mxu0 0
    %256 = vmatprep.subr.bf16.mxu0 0
    %257 = vmatpush1.bf16.msra.mxu0 0
    %258 = vmatprep.mubr.bf16.mxu0 0
    %259 = vmatmul.mubr.bf16.gmra.mrb[0].mxu0 %v181
    %v260 = vpop.f32.mrb[0].mxu0
    %v261 = vadd.f32 %v130, %v260
    %v262 = vpop.f32.mrb[0].mxu0
    %v263 = vadd.f32 %v134, %v262
    %v264 = vpop.f32.mrb[0].mxu0
    %v265 = vadd.f32 %v130, %v264
    %v266 = vpop.f32.mrb[0].mxu0
    %v267 = vadd.f32 %v134, %v266
    %268 = vdwg.mxu0
    %v269 = vmax.f32 %v218, 0.0
    %v270 = vmax.f32 %v220, 0.0
    %v271 = vmax.f32 %v261, 0.0
    %v272 = vmax.f32 %v263, 0.0
    %v273 = vmax.f32 %v222, 0.0
    %v274 = vmax.f32 %v224, 0.0
    %v275 = vmax.f32 %v265, 0.0
    %v276 = vmax.f32 %v267, 0.0
    %v277 = vpack.c.bf16 %v273, %v269
    %v278 = vpack.c.bf16 %v274, %v270
    %v279 = vpack.c.bf16 %v275, %v271
    %v280 = vpack.c.bf16 %v276, %v272
    %v281 = vld [vmem:[#allocation6] sm:$0xff]
    %v282 = vld [vmem:[#allocation6 + $0x8] sm:$0xff]
    %v283 = vld [vmem:[#allocation6 + $0x10] sm:$0xff]
    %v284 = vld [vmem:[#allocation6 + $0x18] sm:$0xff]
    %v285 = vld [vmem:[#allocation6 + $0x20] sm:$0xff]
    %v286 = vld [vmem:[#allocation6 + $0x28] sm:$0xff]
    %v287 = vld [vmem:[#allocation6 + $0x30] sm:$0xff]
    %v288 = vld [vmem:[#allocation6 + $0x38] sm:$0xff]
    %v289 = vld [vmem:[#allocation6 + $0x40] sm:$0xff]
    %v290 = vld [vmem:[#allocation6 + $0x48] sm:$0xff]
    %v291 = vld [vmem:[#allocation6 + $0x50] sm:$0xff]
    %v292 = vld [vmem:[#allocation6 + $0x58] sm:$0xff]
    %v293 = vld [vmem:[#allocation6 + $0x60] sm:$0xff]
    %v294 = vld [vmem:[#allocation6 + $0x68] sm:$0xff]
    %v295 = vld [vmem:[#allocation6 + $0x70] sm:$0xff]
    %v296 = vld [vmem:[#allocation6 + $0x78] sm:$0xff]
    %v297 = vld [vmem:[#allocation6 + $0x80] sm:$0xff]
    %v298 = vld [vmem:[#allocation6 + $0x88] sm:$0xff]
    %v299 = vld [vmem:[#allocation6 + $0x90] sm:$0xff]
    %v300 = vld [vmem:[#allocation6 + $0x98] sm:$0xff]
    %v301 = vld [vmem:[#allocation6 + $0xa0] sm:$0xff]
    %v302 = vld [vmem:[#allocation6 + $0xa8] sm:$0xff]
    %v303 = vld [vmem:[#allocation6 + $0xb0] sm:$0xff]
    %v304 = vld [vmem:[#allocation6 + $0xb8] sm:$0xff]
    %v305 = vld [vmem:[#allocation6 + $0xc0] sm:$0xff]
    %v306 = vld [vmem:[#allocation6 + $0xc8] sm:$0xff]
    %v307 = vld [vmem:[#allocation6 + $0xd0] sm:$0xff]
    %v308 = vld [vmem:[#allocation6 + $0xd8] sm:$0xff]
    %v309 = vld [vmem:[#allocation6 + $0xe0] sm:$0xff]
    %v310 = vld [vmem:[#allocation6 + $0xe8] sm:$0xff]
    %v311 = vld [vmem:[#allocation6 + $0xf0] sm:$0xff]
    %v312 = vld [vmem:[#allocation6 + $0xf8] sm:$0xff]
    %v313 = vld [vmem:[#allocation6 + $0x100] sm:$0xff]
    %v314 = vld [vmem:[#allocation6 + $0x108] sm:$0xff]
    %v315 = vld [vmem:[#allocation6 + $0x110] sm:$0xff]
    %v316 = vld [vmem:[#allocation6 + $0x118] sm:$0xff]
    %v317 = vld [vmem:[#allocation6 + $0x120] sm:$0xff]
    %v318 = vld [vmem:[#allocation6 + $0x128] sm:$0xff]
    %v319 = vld [vmem:[#allocation6 + $0x130] sm:$0xff]
    %v320 = vld [vmem:[#allocation6 + $0x138] sm:$0xff]
    %v321 = vld [vmem:[#allocation6 + $0x140] sm:$0xff]
    %v322 = vld [vmem:[#allocation6 + $0x148] sm:$0xff]
    %v323 = vld [vmem:[#allocation6 + $0x150] sm:$0xff]
    %v324 = vld [vmem:[#allocation6 + $0x158] sm:$0xff]
    %v325 = vld [vmem:[#allocation6 + $0x160] sm:$0xff]
    %v326 = vld [vmem:[#allocation6 + $0x168] sm:$0xff]
    %v327 = vld [vmem:[#allocation6 + $0x170] sm:$0xff]
    %v328 = vld [vmem:[#allocation6 + $0x178] sm:$0xff]
    %v329 = vld [vmem:[#allocation6 + $0x180] sm:$0xff]
    %v330 = vld [vmem:[#allocation6 + $0x188] sm:$0xff]
    %v331 = vld [vmem:[#allocation6 + $0x190] sm:$0xff]
    %v332 = vld [vmem:[#allocation6 + $0x198] sm:$0xff]
    %v333 = vld [vmem:[#allocation6 + $0x1a0] sm:$0xff]
    %v334 = vld [vmem:[#allocation6 + $0x1a8] sm:$0xff]
    %v335 = vld [vmem:[#allocation6 + $0x1b0] sm:$0xff]
    %v336 = vld [vmem:[#allocation6 + $0x1b8] sm:$0xff]
    %v337 = vld [vmem:[#allocation6 + $0x1c0] sm:$0xff]
    %v338 = vld [vmem:[#allocation6 + $0x1c8] sm:$0xff]
    %v339 = vld [vmem:[#allocation6 + $0x1d0] sm:$0xff]
    %v340 = vld [vmem:[#allocation6 + $0x1d8] sm:$0xff]
    %v341 = vld [vmem:[#allocation6 + $0x1e0] sm:$0xff]
    %v342 = vld [vmem:[#allocation6 + $0x1e8] sm:$0xff]
    %v343 = vld [vmem:[#allocation6 + $0x1f0] sm:$0xff]
    %v344 = vld [vmem:[#allocation6 + $0x1f8] sm:$0xff]
    %v345 = vld [vmem:[%s5] sm:$0xff]
    %v347 = vunpack.c.l.b16 %v345
    %v348 = vunpack.c.h.b16 %v345
    %v349 = vpack.c.b16 %v347, %v347
    %v350 = vpack.c.b16 %v348, %v348
    %vm351 = vcmask 64512
    %v353 = vsel %vm351, %v108, 0
    %vm355 = vcmask 1043456
    %v357 = vsel %vm355, %v349, 0
    %v360 = vsel %vm355, %v350, 0
    %362 = vmatprep.subr.bf16.mxu0 %v360
    %363 = vmatpush1.bf16.msra.mxu0 %v357
    %364 = vmatprep.subr.bf16.mxu0 0
    %365 = vmatpush1.bf16.msra.mxu0 0
    %366 = vmatprep.subr.bf16.mxu0 0
    %367 = vmatpush1.bf16.msra.mxu0 0
    %368 = vmatprep.subr.bf16.mxu0 0
    %369 = vmatpush1.bf16.msra.mxu0 0
    %370 = vmatprep.subr.bf16.mxu0 0
    %371 = vmatpush1.bf16.msra.mxu0 0
    %372 = vmatprep.subr.bf16.mxu0 0
    %373 = vmatpush1.bf16.msra.mxu0 0
    %374 = vmatprep.subr.bf16.mxu0 0
    %375 = vmatpush1.bf16.msra.mxu0 0
    %376 = vmatprep.subr.bf16.mxu0 0
    %377 = vmatpush1.bf16.msra.mxu0 0
    %378 = vmatprep.subr.bf16.mxu0 0
    %379 = vmatpush1.bf16.msra.mxu0 0
    %380 = vmatprep.subr.bf16.mxu0 0
    %381 = vmatpush1.bf16.msra.mxu0 0
    %382 = vmatprep.subr.bf16.mxu0 0
    %383 = vmatpush1.bf16.msra.mxu0 0
    %384 = vmatprep.subr.bf16.mxu0 0
    %385 = vmatpush1.bf16.msra.mxu0 0
    %386 = vmatprep.subr.bf16.mxu0 0
    %387 = vmatpush1.bf16.msra.mxu0 0
    %388 = vmatprep.subr.bf16.mxu0 0
    %389 = vmatpush1.bf16.msra.mxu0 0
    %390 = vmatprep.subr.bf16.mxu0 0
    %391 = vmatpush1.bf16.msra.mxu0 0
    %392 = vmatprep.subr.bf16.mxu0 0
    %393 = vmatpush1.bf16.msra.mxu0 0
    %394 = vmatprep.mubr.bf16.mxu0 0
    %395 = vmatmul.mubr.bf16.gmra.mrb[0].mxu0 %v353
    %v396 = vpop.f32.mrb[0].mxu0
    %v397 = vadd.f32 0.0, %v396
    %v398 = vpop.f32.mrb[0].mxu0
    %v399 = vadd.f32 0.0, %v398
    %v400 = vpop.f32.mrb[0].mxu0
    %v401 = vadd.f32 0.0, %v400
    %v402 = vpop.f32.mrb[0].mxu0
    %v403 = vadd.f32 0.0, %v402
    %404 = vdwg.mxu0
    %v469 = vunpack.c.l.b16 %v281
    %v470 = vunpack.c.h.b16 %v281
    %v471 = vunpack.c.l.b16 %v282
    %v472 = vunpack.c.h.b16 %v282
    %v473 = vunpack.c.l.b16 %v283
    %v474 = vunpack.c.h.b16 %v283
    %v475 = vunpack.c.l.b16 %v284
    %v476 = vunpack.c.h.b16 %v284
    %v477 = vunpack.c.l.b16 %v285
    %v478 = vunpack.c.h.b16 %v285
    %v479 = vunpack.c.l.b16 %v286
    %v480 = vunpack.c.h.b16 %v286
    %v481 = vunpack.c.l.b16 %v287
    %v482 = vunpack.c.h.b16 %v287
    %v483 = vunpack.c.l.b16 %v288
    %v484 = vunpack.c.h.b16 %v288
    %v485 = vunpack.c.l.b16 %v289
    %v486 = vunpack.c.h.b16 %v289
    %v487 = vunpack.c.l.b16 %v290
    %v488 = vunpack.c.h.b16 %v290
    %v489 = vunpack.c.l.b16 %v291
    %v490 = vunpack.c.h.b16 %v291
    %v491 = vunpack.c.l.b16 %v292
    %v492 = vunpack.c.h.b16 %v292
    %v493 = vunpack.c.l.b16 %v293
    %v494 = vunpack.c.h.b16 %v293
    %v495 = vunpack.c.l.b16 %v294
    %v496 = vunpack.c.h.b16 %v294
    %v497 = vunpack.c.l.b16 %v295
    %v498 = vunpack.c.h.b16 %v295
    %v499 = vunpack.c.l.b16 %v296
    %v500 = vunpack.c.h.b16 %v296
    %v501 = vunpack.c.l.b16 %v297
    %v502 = vunpack.c.h.b16 %v297
    %v503 = vunpack.c.l.b16 %v298
    %v504 = vunpack.c.h.b16 %v298
    %v505 = vunpack.c.l.b16 %v299
    %v506 = vunpack.c.h.b16 %v299
    %v507 = vunpack.c.l.b16 %v300
    %v508 = vunpack.c.h.b16 %v300
    %v509 = vunpack.c.l.b16 %v301
    %v510 = vunpack.c.h.b16 %v301
    %v511 = vunpack.c.l.b16 %v302
    %v512 = vunpack.c.h.b16 %v302
    %v513 = vunpack.c.l.b16 %v303
    %v514 = vunpack.c.h.b16 %v303
    %v515 = vunpack.c.l.b16 %v304
    %v516 = vunpack.c.h.b16 %v304
    %v517 = vunpack.c.l.b16 %v305
    %v518 = vunpack.c.h.b16 %v305
    %v519 = vunpack.c.l.b16 %v306
    %v520 = vunpack.c.h.b16 %v306
    %v521 = vunpack.c.l.b16 %v307
    %v522 = vunpack.c.h.b16 %v307
    %v523 = vunpack.c.l.b16 %v308
    %v524 = vunpack.c.h.b16 %v308
    %v525 = vunpack.c.l.b16 %v309
    %v526 = vunpack.c.h.b16 %v309
    %v527 = vunpack.c.l.b16 %v310
    %v528 = vunpack.c.h.b16 %v310
    %v529 = vunpack.c.l.b16 %v311
    %v530 = vunpack.c.h.b16 %v311
    %v531 = vunpack.c.l.b16 %v312
    %v532 = vunpack.c.h.b16 %v312
    %v533 = vunpack.c.l.b16 %v313
    %v534 = vunpack.c.h.b16 %v313
    %v535 = vunpack.c.l.b16 %v314
    %v536 = vunpack.c.h.b16 %v314
    %v537 = vunpack.c.l.b16 %v315
    %v538 = vunpack.c.h.b16 %v315
    %v539 = vunpack.c.l.b16 %v316
    %v540 = vunpack.c.h.b16 %v316
    %v541 = vunpack.c.l.b16 %v317
    %v542 = vunpack.c.h.b16 %v317
    %v543 = vunpack.c.l.b16 %v318
    %v544 = vunpack.c.h.b16 %v318
    %v545 = vunpack.c.l.b16 %v319
    %v546 = vunpack.c.h.b16 %v319
    %v547 = vunpack.c.l.b16 %v320
    %v548 = vunpack.c.h.b16 %v320
    %v549 = vunpack.c.l.b16 %v321
    %v550 = vunpack.c.h.b16 %v321
    %v551 = vunpack.c.l.b16 %v322
    %v552 = vunpack.c.h.b16 %v322
    %v553 = vunpack.c.l.b16 %v323
    %v554 = vunpack.c.h.b16 %v323
    %v555 = vunpack.c.l.b16 %v324
    %v556 = vunpack.c.h.b16 %v324
    %v557 = vunpack.c.l.b16 %v325
    %v558 = vunpack.c.h.b16 %v325
    %v559 = vunpack.c.l.b16 %v326
    %v560 = vunpack.c.h.b16 %v326
    %v561 = vunpack.c.l.b16 %v327
    %v562 = vunpack.c.h.b16 %v327
    %v563 = vunpack.c.l.b16 %v328
    %v564 = vunpack.c.h.b16 %v328
    %v565 = vunpack.c.l.b16 %v329
    %v566 = vunpack.c.h.b16 %v329
    %v567 = vunpack.c.l.b16 %v330
    %v568 = vunpack.c.h.b16 %v330
    %v569 = vunpack.c.l.b16 %v331
    %v570 = vunpack.c.h.b16 %v331
    %v571 = vunpack.c.l.b16 %v332
    %v572 = vunpack.c.h.b16 %v332
    %v573 = vunpack.c.l.b16 %v333
    %v574 = vunpack.c.h.b16 %v333
    %v575 = vunpack.c.l.b16 %v334
    %v576 = vunpack.c.h.b16 %v334
    %v577 = vunpack.c.l.b16 %v335
    %v578 = vunpack.c.h.b16 %v335
    %v579 = vunpack.c.l.b16 %v336
    %v580 = vunpack.c.h.b16 %v336
    %v581 = vunpack.c.l.b16 %v337
    %v582 = vunpack.c.h.b16 %v337
    %v583 = vunpack.c.l.b16 %v338
    %v584 = vunpack.c.h.b16 %v338
    %v585 = vunpack.c.l.b16 %v339
    %v586 = vunpack.c.h.b16 %v339
    %v587 = vunpack.c.l.b16 %v340
    %v588 = vunpack.c.h.b16 %v340
    %v589 = vunpack.c.l.b16 %v341
    %v590 = vunpack.c.h.b16 %v341
    %v591 = vunpack.c.l.b16 %v342
    %v592 = vunpack.c.h.b16 %v342
    %v593 = vunpack.c.l.b16 %v343
    %v594 = vunpack.c.h.b16 %v343
    %v595 = vunpack.c.l.b16 %v344
    %v596 = vunpack.c.h.b16 %v344
    %v597 = vpack.c.b16 %v471, %v469
    %v598 = vpack.c.b16 %v472, %v470
    %v599 = vpack.c.b16 %v475, %v473
    %v600 = vpack.c.b16 %v476, %v474
    %v601 = vpack.c.b16 %v479, %v477
    %v602 = vpack.c.b16 %v480, %v478
    %v603 = vpack.c.b16 %v483, %v481
    %v604 = vpack.c.b16 %v484, %v482
    %v605 = vpack.c.b16 %v487, %v485
    %v606 = vpack.c.b16 %v488, %v486
    %v607 = vpack.c.b16 %v491, %v489
    %v608 = vpack.c.b16 %v492, %v490
    %v609 = vpack.c.b16 %v495, %v493
    %v610 = vpack.c.b16 %v496, %v494
    %v611 = vpack.c.b16 %v499, %v497
    %v612 = vpack.c.b16 %v500, %v498
    %v613 = vpack.c.b16 %v503, %v501
    %v614 = vpack.c.b16 %v504, %v502
    %v615 = vpack.c.b16 %v507, %v505
    %v616 = vpack.c.b16 %v508, %v506
    %v617 = vpack.c.b16 %v511, %v509
    %v618 = vpack.c.b16 %v512, %v510
    %v619 = vpack.c.b16 %v515, %v513
    %v620 = vpack.c.b16 %v516, %v514
    %v621 = vpack.c.b16 %v519, %v517
    %v622 = vpack.c.b16 %v520, %v518
    %v623 = vpack.c.b16 %v523, %v521
    %v624 = vpack.c.b16 %v524, %v522
    %v625 = vpack.c.b16 %v527, %v525
    %v626 = vpack.c.b16 %v528, %v526
    %v627 = vpack.c.b16 %v531, %v529
    %v628 = vpack.c.b16 %v532, %v530
    %v629 = vpack.c.b16 %v535, %v533
    %v630 = vpack.c.b16 %v536, %v534
    %v631 = vpack.c.b16 %v539, %v537
    %v632 = vpack.c.b16 %v540, %v538
    %v633 = vpack.c.b16 %v543, %v541
    %v634 = vpack.c.b16 %v544, %v542
    %v635 = vpack.c.b16 %v547, %v545
    %v636 = vpack.c.b16 %v548, %v546
    %v637 = vpack.c.b16 %v551, %v549
    %v638 = vpack.c.b16 %v552, %v550
    %v639 = vpack.c.b16 %v555, %v553
    %v640 = vpack.c.b16 %v556, %v554
    %v641 = vpack.c.b16 %v559, %v557
    %v642 = vpack.c.b16 %v560, %v558
    %v643 = vpack.c.b16 %v563, %v561
    %v644 = vpack.c.b16 %v564, %v562
    %v645 = vpack.c.b16 %v567, %v565
    %v646 = vpack.c.b16 %v568, %v566
    %v647 = vpack.c.b16 %v571, %v569
    %v648 = vpack.c.b16 %v572, %v570
    %v649 = vpack.c.b16 %v575, %v573
    %v650 = vpack.c.b16 %v576, %v574
    %v651 = vpack.c.b16 %v579, %v577
    %v652 = vpack.c.b16 %v580, %v578
    %v653 = vpack.c.b16 %v583, %v581
    %v654 = vpack.c.b16 %v584, %v582
    %v655 = vpack.c.b16 %v587, %v585
    %v656 = vpack.c.b16 %v588, %v586
    %v657 = vpack.c.b16 %v591, %v589
    %v658 = vpack.c.b16 %v592, %v590
    %v659 = vpack.c.b16 %v595, %v593
    %v660 = vpack.c.b16 %v596, %v594
    %725 = vmatprep.subr.bf16.mxu0 %v598
    %726 = vmatpush1.bf16.msra.mxu0 %v597
    %727 = vmatprep.subr.bf16.mxu0 %v600
    %728 = vmatpush1.bf16.msra.mxu0 %v599
    %729 = vmatprep.subr.bf16.mxu0 %v602
    %730 = vmatpush1.bf16.msra.mxu0 %v601
    %731 = vmatprep.subr.bf16.mxu0 %v604
    %732 = vmatpush1.bf16.msra.mxu0 %v603
    %733 = vmatprep.subr.bf16.mxu0 %v606
    %734 = vmatpush1.bf16.msra.mxu0 %v605
    %735 = vmatprep.subr.bf16.mxu0 %v608
    %736 = vmatpush1.bf16.msra.mxu0 %v607
    %737 = vmatprep.subr.bf16.mxu0 %v610
    %738 = vmatpush1.bf16.msra.mxu0 %v609
    %739 = vmatprep.subr.bf16.mxu0 %v612
    %740 = vmatpush1.bf16.msra.mxu0 %v611
    %741 = vmatprep.subr.bf16.mxu0 %v614
    %742 = vmatpush1.bf16.msra.mxu0 %v613
    %743 = vmatprep.subr.bf16.mxu0 %v616
    %744 = vmatpush1.bf16.msra.mxu0 %v615
    %745 = vmatprep.subr.bf16.mxu0 %v618
    %746 = vmatpush1.bf16.msra.mxu0 %v617
    %747 = vmatprep.subr.bf16.mxu0 %v620
    %748 = vmatpush1.bf16.msra.mxu0 %v619
    %749 = vmatprep.subr.bf16.mxu0 %v622
    %750 = vmatpush1.bf16.msra.mxu0 %v621
    %751 = vmatprep.subr.bf16.mxu0 %v624
    %752 = vmatpush1.bf16.msra.mxu0 %v623
    %753 = vmatprep.subr.bf16.mxu0 %v626
    %754 = vmatpush1.bf16.msra.mxu0 %v625
    %755 = vmatprep.subr.bf16.mxu0 %v628
    %756 = vmatpush1.bf16.msra.mxu0 %v627
    %757 = vmatprep.mubr.bf16.mxu0 %v278
    %758 = vmatmul.mubr.bf16.gmra.mrb[0].mxu0 %v277
    %v759 = vpop.f32.mrb[0].mxu0
    %v760 = vadd.f32 %v397, %v759
    %v761 = vpop.f32.mrb[0].mxu0
    %v762 = vadd.f32 %v399, %v761
    %v763 = vpop.f32.mrb[0].mxu0
    %v764 = vadd.f32 %v401, %v763
    %v765 = vpop.f32.mrb[0].mxu0
    %v766 = vadd.f32 %v403, %v765
    %767 = vdwg.mxu0
    %768 = vmatprep.subr.bf16.mxu0 %v630
    %769 = vmatpush1.bf16.msra.mxu0 %v629
    %770 = vmatprep.subr.bf16.mxu0 %v632
    %771 = vmatpush1.bf16.msra.mxu0 %v631
    %772 = vmatprep.subr.bf16.mxu0 %v634
    %773 = vmatpush1.bf16.msra.mxu0 %v633
    %774 = vmatprep.subr.bf16.mxu0 %v636
    %775 = vmatpush1.bf16.msra.mxu0 %v635
    %776 = vmatprep.subr.bf16.mxu0 %v638
    %777 = vmatpush1.bf16.msra.mxu0 %v637
    %778 = vmatprep.subr.bf16.mxu0 %v640
    %779 = vmatpush1.bf16.msra.mxu0 %v639
    %780 = vmatprep.subr.bf16.mxu0 %v642
    %781 = vmatpush1.bf16.msra.mxu0 %v641
    %782 = vmatprep.subr.bf16.mxu0 %v644
    %783 = vmatpush1.bf16.msra.mxu0 %v643
    %784 = vmatprep.subr.bf16.mxu0 %v646
    %785 = vmatpush1.bf16.msra.mxu0 %v645
    %786 = vmatprep.subr.bf16.mxu0 %v648
    %787 = vmatpush1.bf16.msra.mxu0 %v647
    %788 = vmatprep.subr.bf16.mxu0 %v650
    %789 = vmatpush1.bf16.msra.mxu0 %v649
    %790 = vmatprep.subr.bf16.mxu0 %v652
    %791 = vmatpush1.bf16.msra.mxu0 %v651
    %792 = vmatprep.subr.bf16.mxu0 %v654
    %793 = vmatpush1.bf16.msra.mxu0 %v653
    %794 = vmatprep.subr.bf16.mxu0 %v656
    %795 = vmatpush1.bf16.msra.mxu0 %v655
    %796 = vmatprep.subr.bf16.mxu0 %v658
    %797 = vmatpush1.bf16.msra.mxu0 %v657
    %798 = vmatprep.subr.bf16.mxu0 %v660
    %799 = vmatpush1.bf16.msra.mxu0 %v659
    %800 = vmatprep.mubr.bf16.mxu0 %v280
    %801 = vmatmul.mubr.bf16.gmra.mrb[0].mxu0 %v279
    %v802 = vpop.f32.mrb[0].mxu0
    %v803 = vadd.f32 %v760, %v802
    %v804 = vpop.f32.mrb[0].mxu0
    %v805 = vadd.f32 %v762, %v804
    %v806 = vpop.f32.mrb[0].mxu0
    %v807 = vadd.f32 %v764, %v806
    %v808 = vpop.f32.mrb[0].mxu0
    %v809 = vadd.f32 %v766, %v808
    %810 = vdwg.mxu0
    %v811 = vld [vmem:[%s6] sm:$0x3]
    %v813 = vlaneseq
    %v814 = vshrl.u32 %v813, 7
    %v815 = vsub.s32 0, %v814
    %v816 = vrot.slane %v811, %v815
    %v817 = vlaneseq
    %v818 = vshrl.u32 %v817, 7
    %v819 = vsub.s32 1, %v818
    %v820 = vrot.slane %v811, %v819
    %v823 = vadd.f32 %v803, %v816
    %v824 = vadd.f32 %v805, %v820
    %v825 = vadd.f32 %v807, %v816
    %v826 = vadd.f32 %v809, %v820
    %v827 = vmax.f32 %v823, 0.0
    %v828 = vmax.f32 %v824, 0.0
    %v829 = vmax.f32 %v825, 0.0
    %v830 = vmax.f32 %v826, 0.0
    %v831 = vpack.c.bf16 %v829, %v827
    %v832 = vpack.c.bf16 %v830, %v828
    %v833 = vld [vmem:[#allocation8] sm:$0xf]
    %v834 = vld [vmem:[#allocation8 + $0x4] sm:$0xf]
    %v835 = vld [vmem:[#allocation8 + $0x8] sm:$0xf]
    %v836 = vld [vmem:[#allocation8 + $0xc] sm:$0xf]
    %v837 = vld [vmem:[#allocation8 + $0x10] sm:$0xf]
    %v838 = vld [vmem:[#allocation8 + $0x14] sm:$0xf]
    %v839 = vld [vmem:[#allocation8 + $0x18] sm:$0xf]
    %v840 = vld [vmem:[#allocation8 + $0x1c] sm:$0xf]
    %v841 = vld [vmem:[#allocation8 + $0x20] sm:$0xf]
    %v842 = vld [vmem:[#allocation8 + $0x24] sm:$0xf]
    %v843 = vld [vmem:[#allocation8 + $0x28] sm:$0xf]
    %v844 = vld [vmem:[#allocation8 + $0x2c] sm:$0xf]
    %v845 = vld [vmem:[#allocation8 + $0x30] sm:$0xf]
    %v846 = vld [vmem:[#allocation8 + $0x34] sm:$0xf]
    %v847 = vld [vmem:[#allocation8 + $0x38] sm:$0xf]
    %v848 = vld [vmem:[#allocation8 + $0x3c] sm:$0xf]
    %v849 = vld [vmem:[#allocation8 + $0x40] sm:$0xf]
    %v850 = vld [vmem:[#allocation8 + $0x44] sm:$0xf]
    %v851 = vld [vmem:[#allocation8 + $0x48] sm:$0xf]
    %v852 = vld [vmem:[#allocation8 + $0x4c] sm:$0xf]
    %v853 = vld [vmem:[#allocation8 + $0x50] sm:$0xf]
    %v854 = vld [vmem:[#allocation8 + $0x54] sm:$0xf]
    %v855 = vld [vmem:[#allocation8 + $0x58] sm:$0xf]
    %v856 = vld [vmem:[#allocation8 + $0x5c] sm:$0xf]
    %v857 = vld [vmem:[#allocation8 + $0x60] sm:$0xf]
    %v858 = vld [vmem:[#allocation8 + $0x64] sm:$0xf]
    %v859 = vld [vmem:[#allocation8 + $0x68] sm:$0xf]
    %v860 = vld [vmem:[#allocation8 + $0x6c] sm:$0xf]
    %v861 = vld [vmem:[#allocation8 + $0x70] sm:$0xf]
    %v862 = vld [vmem:[#allocation8 + $0x74] sm:$0xf]
    %v863 = vld [vmem:[#allocation8 + $0x78] sm:$0xf]
    %v864 = vld [vmem:[#allocation8 + $0x7c] sm:$0xf]
    %v865 = vld [vmem:[%s8] sm:$0x1]
    %v867 = vlaneseq
    %v868 = vshrl.u32 %v867, 7
    %v869 = vsub.s32 0, %v868
    %v870 = vrot.slane %v865, %v869
    %v904 = vunpack.c.l.b16 %v833
    %v905 = vunpack.c.l.b16 %v834
    %v906 = vunpack.c.l.b16 %v835
    %v907 = vunpack.c.l.b16 %v836
    %v908 = vunpack.c.l.b16 %v837
    %v909 = vunpack.c.l.b16 %v838
    %v910 = vunpack.c.l.b16 %v839
    %v911 = vunpack.c.l.b16 %v840
    %v912 = vunpack.c.l.b16 %v841
    %v913 = vunpack.c.l.b16 %v842
    %v914 = vunpack.c.l.b16 %v843
    %v915 = vunpack.c.l.b16 %v844
    %v916 = vunpack.c.l.b16 %v845
    %v917 = vunpack.c.l.b16 %v846
    %v918 = vunpack.c.l.b16 %v847
    %v919 = vunpack.c.l.b16 %v848
    %v920 = vunpack.c.l.b16 %v849
    %v921 = vunpack.c.l.b16 %v850
    %v922 = vunpack.c.l.b16 %v851
    %v923 = vunpack.c.l.b16 %v852
    %v924 = vunpack.c.l.b16 %v853
    %v925 = vunpack.c.l.b16 %v854
    %v926 = vunpack.c.l.b16 %v855
    %v927 = vunpack.c.l.b16 %v856
    %v928 = vunpack.c.l.b16 %v857
    %v929 = vunpack.c.l.b16 %v858
    %v930 = vunpack.c.l.b16 %v859
    %v931 = vunpack.c.l.b16 %v860
    %v932 = vunpack.c.l.b16 %v861
    %v933 = vunpack.c.l.b16 %v862
    %v934 = vunpack.c.l.b16 %v863
    %v935 = vunpack.c.l.b16 %v864
    %v936 = vpack.c.b16 %v905, %v904
    %v937 = vpack.c.b16 %v907, %v906
    %v938 = vpack.c.b16 %v909, %v908
    %v939 = vpack.c.b16 %v911, %v910
    %v940 = vpack.c.b16 %v913, %v912
    %v941 = vpack.c.b16 %v915, %v914
    %v942 = vpack.c.b16 %v917, %v916
    %v943 = vpack.c.b16 %v919, %v918
    %v944 = vpack.c.b16 %v921, %v920
    %v945 = vpack.c.b16 %v923, %v922
    %v946 = vpack.c.b16 %v925, %v924
    %v947 = vpack.c.b16 %v927, %v926
    %v948 = vpack.c.b16 %v929, %v928
    %v949 = vpack.c.b16 %v931, %v930
    %v950 = vpack.c.b16 %v933, %v932
    %v951 = vpack.c.b16 %v935, %v934
    %968 = vmatprep.subr.bf16.mxu0 0
    %969 = vmatpush1.bf16.msra.mxu0 %v936
    %970 = vmatprep.subr.bf16.mxu0 0
    %971 = vmatpush1.bf16.msra.mxu0 %v937
    %972 = vmatprep.subr.bf16.mxu0 0
    %973 = vmatpush1.bf16.msra.mxu0 %v938
    %974 = vmatprep.subr.bf16.mxu0 0
    %975 = vmatpush1.bf16.msra.mxu0 %v939
    %976 = vmatprep.subr.bf16.mxu0 0
    %977 = vmatpush1.bf16.msra.mxu0 %v940
    %978 = vmatprep.subr.bf16.mxu0 0
    %979 = vmatpush1.bf16.msra.mxu0 %v941
    %980 = vmatprep.subr.bf16.mxu0 0
    %981 = vmatpush1.bf16.msra.mxu0 %v942
    %982 = vmatprep.subr.bf16.mxu0 0
    %983 = vmatpush1.bf16.msra.mxu0 %v943
    %984 = vmatprep.subr.bf16.mxu0 0
    %985 = vmatpush1.bf16.msra.mxu0 %v944
    %986 = vmatprep.subr.bf16.mxu0 0
    %987 = vmatpush1.bf16.msra.mxu0 %v945
    %988 = vmatprep.subr.bf16.mxu0 0
    %989 = vmatpush1.bf16.msra.mxu0 %v946
    %990 = vmatprep.subr.bf16.mxu0 0
    %991 = vmatpush1.bf16.msra.mxu0 %v947
    %992 = vmatprep.subr.bf16.mxu0 0
    %993 = vmatpush1.bf16.msra.mxu0 %v948
    %994 = vmatprep.subr.bf16.mxu0 0
    %995 = vmatpush1.bf16.msra.mxu0 %v949
    %996 = vmatprep.subr.bf16.mxu0 0
    %997 = vmatpush1.bf16.msra.mxu0 %v950
    %998 = vmatprep.subr.bf16.mxu0 0
    %999 = vmatpush1.bf16.msra.mxu0 %v951
    %1000 = vmatprep.mubr.bf16.mxu0 %v832
    %1001 = vmatmul.mubr.bf16.gmra.mrb[0].mxu0 %v831
    %v1002 = vpop.f32.mrb[0].mxu0
    %v1003 = vadd.f32 %v870, %v1002
    %v1004 = vpop.f32.mrb[0].mxu0
    %v1005 = vpop.f32.mrb[0].mxu0
    %v1006 = vadd.f32 %v870, %v1005
    %v1007 = vpop.f32.mrb[0].mxu0
    %1008 = vdwg.mxu0
    %v1009 = vmax.f32 %v1003, 0.0
    %v1010 = vmax.f32 %v1006, 0.0
    %v1011 = vpack.c.bf16 %v1010, %v1009
    %v1012 = vld [vmem:[#allocation9] sm:$0xf]
    %v1013 = vld [vmem:[#allocation9 + $0x4] sm:$0xf]
    %v1014 = vld [vmem:[#allocation9 + $0x8] sm:$0xf]
    %v1015 = vld [vmem:[#allocation9 + $0xc] sm:$0xf]
    %v1016 = vld [vmem:[#allocation9 + $0x10] sm:$0xf]
    %v1017 = vld [vmem:[#allocation9 + $0x14] sm:$0xf]
    %v1018 = vld [vmem:[#allocation9 + $0x18] sm:$0xf]
    %v1019 = vld [vmem:[#allocation9 + $0x1c] sm:$0xf]
    %v1020 = vld [vmem:[#allocation9 + $0x20] sm:$0xf]
    %v1021 = vld [vmem:[#allocation9 + $0x24] sm:$0xf]
    %v1022 = vld [vmem:[#allocation9 + $0x28] sm:$0xf]
    %v1023 = vld [vmem:[#allocation9 + $0x2c] sm:$0xf]
    %v1024 = vld [vmem:[#allocation9 + $0x30] sm:$0xf]
    %v1025 = vld [vmem:[#allocation9 + $0x34] sm:$0xf]
    %v1026 = vld [vmem:[#allocation9 + $0x38] sm:$0xf]
    %v1027 = vld [vmem:[#allocation9 + $0x3c] sm:$0xf]
    %v1028 = vld [vmem:[%s10] sm:$0x1]
    %v1030 = vlaneseq
    %v1031 = vshrl.u32 %v1030, 7
    %v1032 = vsub.s32 0, %v1031
    %v1033 = vrot.slane %v1028, %v1032
    %v1051 = vunpack.c.l.b16 %v1012
    %v1052 = vunpack.c.l.b16 %v1013
    %v1053 = vunpack.c.l.b16 %v1014
    %v1054 = vunpack.c.l.b16 %v1015
    %v1055 = vunpack.c.l.b16 %v1016
    %v1056 = vunpack.c.l.b16 %v1017
    %v1057 = vunpack.c.l.b16 %v1018
    %v1058 = vunpack.c.l.b16 %v1019
    %v1059 = vunpack.c.l.b16 %v1020
    %v1060 = vunpack.c.l.b16 %v1021
    %v1061 = vunpack.c.l.b16 %v1022
    %v1062 = vunpack.c.l.b16 %v1023
    %v1063 = vunpack.c.l.b16 %v1024
    %v1064 = vunpack.c.l.b16 %v1025
    %v1065 = vunpack.c.l.b16 %v1026
    %v1066 = vunpack.c.l.b16 %v1027
    %v1067 = vpack.c.b16 %v1052, %v1051
    %v1068 = vpack.c.b16 %v1054, %v1053
    %v1069 = vpack.c.b16 %v1056, %v1055
    %v1070 = vpack.c.b16 %v1058, %v1057
    %v1071 = vpack.c.b16 %v1060, %v1059
    %v1072 = vpack.c.b16 %v1062, %v1061
    %v1073 = vpack.c.b16 %v1064, %v1063
    %v1074 = vpack.c.b16 %v1066, %v1065
    %1083 = vmatprep.subr.bf16.mxu0 0
    %1084 = vmatpush1.bf16.msra.mxu0 %v1067
    %1085 = vmatprep.subr.bf16.mxu0 0
    %1086 = vmatpush1.bf16.msra.mxu0 %v1068
    %1087 = vmatprep.subr.bf16.mxu0 0
    %1088 = vmatpush1.bf16.msra.mxu0 %v1069
    %1089 = vmatprep.subr.bf16.mxu0 0
    %1090 = vmatpush1.bf16.msra.mxu0 %v1070
    %1091 = vmatprep.subr.bf16.mxu0 0
    %1092 = vmatpush1.bf16.msra.mxu0 %v1071
    %1093 = vmatprep.subr.bf16.mxu0 0
    %1094 = vmatpush1.bf16.msra.mxu0 %v1072
    %1095 = vmatprep.subr.bf16.mxu0 0
    %1096 = vmatpush1.bf16.msra.mxu0 %v1073
    %1097 = vmatprep.subr.bf16.mxu0 0
    %1098 = vmatpush1.bf16.msra.mxu0 %v1074
    %1099 = vmatprep.subr.bf16.mxu0 0
    %1100 = vmatpush1.bf16.msra.mxu0 0
    %1101 = vmatprep.subr.bf16.mxu0 0
    %1102 = vmatpush1.bf16.msra.mxu0 0
    %1103 = vmatprep.subr.bf16.mxu0 0
    %1104 = vmatpush1.bf16.msra.mxu0 0
    %1105 = vmatprep.subr.bf16.mxu0 0
    %1106 = vmatpush1.bf16.msra.mxu0 0
    %1107 = vmatprep.subr.bf16.mxu0 0
    %1108 = vmatpush1.bf16.msra.mxu0 0
    %1109 = vmatprep.subr.bf16.mxu0 0
    %1110 = vmatpush1.bf16.msra.mxu0 0
    %1111 = vmatprep.subr.bf16.mxu0 0
    %1112 = vmatpush1.bf16.msra.mxu0 0
    %1113 = vmatprep.subr.bf16.mxu0 0
    %1114 = vmatpush1.bf16.msra.mxu0 0
    %1115 = vmatprep.mubr.bf16.mxu0 0
    %1116 = vmatmul.mubr.bf16.gmra.mrb[0].mxu0 %v1011
    %v1117 = vpop.f32.mrb[0].mxu0
    %v1118 = vadd.f32 %v1033, %v1117
    %v1119 = vpop.f32.mrb[0].mxu0
    %v1120 = vpop.f32.mrb[0].mxu0
    %v1121 = vadd.f32 %v1033, %v1120
    %v1122 = vpop.f32.mrb[0].mxu0
    %1123 = vdwg.mxu0
    %v1124 = vmax.f32 %v1118, 0.0
    %v1125 = vmax.f32 %v1121, 0.0
    %v1126 = vld [vmem:[%s11] sm:$0x1]
    %v1128 = vlaneseq
    %v1129 = vshrl.u32 %v1128, 7
    %v1130 = vsub.s32 0, %v1129
    %v1131 = vrot.slane %v1126, %v1130
    %v1133 = vmul.f32 %v1124, %v1131
    %v1134 = vmul.f32 %v1125, %v1131
    %1135 = vadd.xlane.f32.xlu0 %v1133
    %v1136 = vpop.xlane.xlu0 %1135
    %1137 = vadd.xlane.f32.xlu0 %v1134
    %v1138 = vpop.xlane.xlu0 %1137
    %v1139 = vld [vmem:[#allocation2] sm:$0x1]
    %v1141 = vlaneseq
    %v1142 = vshrl.u32 %v1141, 7
    %v1143 = vsub.s32 0, %v1142
    %v1144 = vrot.slane %v1139, %v1143
    %v1146 = vadd.f32 %v1136, %v1144
    %v1147 = vadd.f32 %v1138, %v1144
    %1150 = vset.pattern.permute.xlu0 0
    %1151 = vperm.xlu0 %1150, %v1146
    %v1152 = vpop.permute.xlu0 %1151
    %1153 = vset.pattern.permute.xlu0 0
    %1154 = vperm.xlu0 %1153, %v1147
    %v1155 = vpop.permute.xlu0 %1154
    %v1156 = vlaneseq
    %v1157 = vand.u32 %v1156, 127
    %v1158 = vlaneseq
    %v1159 = vshrl.u32 %v1158, 7
    %v1160 = vsub.s32 %v1157, %v1159
    %v1161 = vrot.slane %v1152, %v1160
    %v1162 = vadd.s32 %v1157, 4294967288
    %v1163 = vlaneseq
    %v1164 = vshrl.u32 %v1163, 7
    %v1165 = vsub.s32 %v1162, %v1164
    %v1166 = vrot.slane %v1155, %v1165
    %vm1167 = vcmask 130112
    %v1168 = vsel %vm1167, %v1166, %v1161
    %vm1170 = vcmask 122880
    %1171 = vst.msk [vmem:[#allocation11] sm:$0x1] %vm1170, %v1168
    // Predicated region
    $region70: #{tpu_custom_call.1} parent=1 // pred_check
      _
    $region71: #{tpu_custom_call.1} parent=1 // pred_check_branch
      %1173 = sbr.rel (0) target = $region73
    $region72: #{tpu_custom_call.1} parent=1 // pred_region
      %s1175 = ssub.s32 16, 16
      %1176 = vsyncadd [#allocation5], %s1175
      %s1178 = sshll.u32 [#allocation11], 4
      %s1179 = int_to_ptr.vmem [resolvable:$true] %s1178
      %1181 = dma.vmem_to_hbm [thread:$0]  %s1179, 16, %s13, [#allocation5]
    $region73: #{tpu_custom_call.1} parent=1 // pred_fallthru
      _
    // Predicated region
    $region74: #{tpu_custom_call.1} parent=1 // pred_check
      _
    $region75: #{tpu_custom_call.1} parent=1 // pred_check_branch
      %1183 = sbr.rel (0) target = $region77
    $region76: #{tpu_custom_call.1} parent=1 // pred_region
      %1184 = dma.done [#allocation5], 16
    $region77: #{tpu_custom_call.1} parent=1 // pred_fallthru
      _
    %1185 = vsyncpa [#allocation4], 1
    %1186 = vsyncpa [#allocation7], 1
    %1187 = vsyncpa [#allocation10], 1
    %1188 = vsyncpa [#allocation5], 1

</llo_original>
